<compile_context>
chip_gen: v5e
topology: v5e:2x2
jax: 0.10.0
libtpu: 0.0.40
codegen_flags: <defaults>
</compile_context>

<pallas_src>
import math
import functools

import jax
import jax.numpy as jnp
from jax.experimental import pallas as pl
from jax.experimental.pallas import tpu as pltpu


# ----------------------------------------------------------------------------
# Tiling helpers
# ----------------------------------------------------------------------------
def _tile(dim, preferred, align):
    """Largest tile <= `preferred` that divides `dim` and is `align`-aligned, else full dim."""
    if dim <= preferred:
        return dim
    t = (preferred // align) * align
    while t >= align:
        if dim % t == 0:
            return t
        t -= align
    return dim  # no aligned divisor; fall back to the full (always-legal) dimension


def _pick_heads_per_block(n_heads, d_k, lane=128):
    """Smallest head group whose packed feature width is a multiple of 128 lanes."""
    for hb in range(1, n_heads + 1):
        if n_heads % hb == 0 and (hb * d_k) % lane == 0:
            return hb
    return None


# ----------------------------------------------------------------------------
# Tiled linear (GEMM + bias) kernel
# ----------------------------------------------------------------------------
def _linear_kernel(x_ref, w_ref, b_ref, o_ref, acc_ref):
    """One (tm, tn) output tile, accumulated over the K grid axis (last, 'arbitrary')."""
    @pl.when(pl.program_id(2) == 0)
    def _():
        acc_ref[...] = jnp.zeros_like(acc_ref)

    acc_ref[...] += jnp.dot(x_ref[...], w_ref[...],
                            preferred_element_type=jnp.float32)

    @pl.when(pl.program_id(2) == pl.num_programs(2) - 1)
    def _():
        o_ref[...] = (acc_ref[...] + b_ref[...]).astype(o_ref.dtype)


def pallas_linear(x2d, w_t, bias, *, tm=256, tn=512, tk=512):
    """x2d: (M, K), w_t: (K, N) (already transposed), bias: (N,) -> (M, N)."""
    M, K = x2d.shape
    K2, N = w_t.shape
    assert K == K2 and bias.shape == (N,)

    tm = _tile(M, tm, 8)      # sublane-aligned
    tn = _tile(N, tn, 128)    # lane-aligned (dense vst)
    tk = _tile(K, tk, 128)
    grid = (M // tm, N // tn, K // tk)

    itemsize = x2d.dtype.itemsize
    needed = itemsize * 2 * (tm * tk + tk * tn + tm * tn + tn) + 4 * tm * tn
    vmem_limit = int(min(64 * 1024 * 1024, max(2 * needed, 32 * 1024 * 1024)))
    cost = pl.CostEstimate(
        flops=int(2 * M * N * K),
        transcendentals=0,
        bytes_accessed=int(itemsize * (M * K + K * N + M * N + N)))

    return pl.pallas_call(
        _linear_kernel,
        out_shape=jax.ShapeDtypeStruct((M, N), x2d.dtype),
        grid_spec=pltpu.PrefetchScalarGridSpec(
            num_scalar_prefetch=0,
            grid=grid,
            in_specs=[
                pl.BlockSpec((tm, tk), lambda i, j, k: (i, k)),
                pl.BlockSpec((tk, tn), lambda i, j, k: (k, j)),
                pl.BlockSpec((1, tn), lambda i, j, k: (0, j)),
            ],
            out_specs=pl.BlockSpec((tm, tn), lambda i, j, k: (i, j)),
            scratch_shapes=[pltpu.VMEM((tm, tn), jnp.float32)]),
        compiler_params=pltpu.CompilerParams(
            dimension_semantics=("parallel", "parallel", "arbitrary"),
            vmem_limit_bytes=vmem_limit),
        cost_estimate=cost,
    )(x2d, w_t, bias.reshape(1, N))


# ----------------------------------------------------------------------------
# Flash-style attention kernel (head split via BlockSpec index_map, no transposes)
# ----------------------------------------------------------------------------
def _flash_attention_kernel(q_ref, k_ref, v_ref, o_ref, m_sc, l_sc, acc_sc, *, heads, d_k):
    """Online-softmax attention for one (batch, head-group, q-tile) across kv tiles.

    q_ref: (1, tq, heads*d_k)    k_ref / v_ref: (1, tk, heads*d_k)
    o_ref: (1, tq, heads*d_k)    -- written only on the last kv step.
    The 1/sqrt(d_k) scale is already folded into the Q projection weights.
    """
    ki = pl.program_id(3)

    @pl.when(ki == 0)
    def _():
        m_sc[...] = jnp.full_like(m_sc, -jnp.inf)
        l_sc[...] = jnp.zeros_like(l_sc)
        acc_sc[...] = jnp.zeros_like(acc_sc)

    q = q_ref[0]                      # (tq, heads*d_k)
    k = k_ref[0]                      # (tk, heads*d_k)
    v = v_ref[0]                      # (tk, heads*d_k)

    for h in range(heads):            # static unroll; heads per block is small (1-2)
        lo, hi = h * d_k, (h + 1) * d_k
        q_h, k_h, v_h = q[:, lo:hi], k[:, lo:hi], v[:, lo:hi]

        # QK^T without an explicit transpose: contract the d_k axes directly on the MXU.
        s = jax.lax.dot_general(q_h, k_h, (((1,), (1,)), ((), ())),
                                preferred_element_type=jnp.float32)       # (tq, tk)

        m_prev = m_sc[h]                                                  # (tq, 1)
        m_new = jnp.maximum(m_prev, jnp.max(s, axis=-1, keepdims=True))
        alpha = jnp.exp(m_prev - m_new)
        p = jnp.exp(s - m_new)                                            # f32 softmax math
        l_sc[h] = alpha * l_sc[h] + jnp.sum(p, axis=-1, keepdims=True)
        acc_sc[h] = alpha * acc_sc[h] + jax.lax.dot_general(
            p.astype(v_h.dtype), v_h, (((1,), (0,)), ((), ())),
            preferred_element_type=jnp.float32)
        m_sc[h] = m_new

    @pl.when(ki == pl.num_programs(3) - 1)
    def _():
        for h in range(heads):
            inv_l = pl.reciprocal(l_sc[h], approx=True)   # EUP slot; off the hot loop
            o_ref[0, :, h * d_k:(h + 1) * d_k] = (acc_sc[h] * inv_l).astype(o_ref.dtype)


def pallas_flash_attention(proj, *, n_heads, d_k, out_dtype=None, tq=256, tk=256):
    """proj: (B, S, 3E) fused Q|K|V projection -> attention output (B, S, E)."""
    B, S, F3 = proj.shape
    E = n_heads * d_k
    assert F3 == 3 * E
    out_dtype = out_dtype or proj.dtype

    hb = _pick_heads_per_block(n_heads, d_k)
    if hb is None:
        # TODO(synk): fallback (XLA-side head split) for head dims with no 128-lane-aligned group.
        raise NotImplementedError(
            f"head_dim={d_k} with {n_heads} heads has no 128-lane-aligned head grouping")
    n_hg = n_heads // hb
    fb = hb * d_k                     # packed feature width per grid step (>= 128 lanes)

    tq = _tile(S, tq, 8)
    tk = _tile(S, tk, 8)
    grid = (B, n_hg, S // tq, S // tk)

    kernel = functools.partial(_flash_attention_kernel, heads=hb, d_k=d_k)

    itemsize = proj.dtype.itemsize
    needed = itemsize * 2 * (2 * tq * fb + 2 * tk * fb) + 4 * hb * tq * (d_k + 2)
    vmem_limit = int(min(64 * 1024 * 1024, max(2 * needed, 32 * 1024 * 1024)))
    cost = pl.CostEstimate(
        flops=int(4 * B * n_heads * S * S * d_k),
        transcendentals=int(B * n_heads * S * S),
        bytes_accessed=int(itemsize * (3 * B * S * E + B * S * E)))

    return pl.pallas_call(
        kernel,
        out_shape=jax.ShapeDtypeStruct((B, S, E), out_dtype),
        grid_spec=pltpu.PrefetchScalarGridSpec(
            num_scalar_prefetch=0,
            grid=grid,
            in_specs=[
                # Q / K / V sections of `proj`, selected purely via block index_maps.
                pl.BlockSpec((1, tq, fb), lambda b, hg, qi, ki: (b, qi, hg)),
                pl.BlockSpec((1, tk, fb), lambda b, hg, qi, ki: (b, ki, n_hg + hg)),
                pl.BlockSpec((1, tk, fb), lambda b, hg, qi, ki: (b, ki, 2 * n_hg + hg)),
            ],
            out_specs=pl.BlockSpec((1, tq, fb), lambda b, hg, qi, ki: (b, qi, hg)),
            scratch_shapes=[
                pltpu.VMEM((hb, tq, 1), jnp.float32),     # running max
                pltpu.VMEM((hb, tq, 1), jnp.float32),     # running denominator
                pltpu.VMEM((hb, tq, d_k), jnp.float32),   # running output accumulator
            ]),
        compiler_params=pltpu.CompilerParams(
            dimension_semantics=("parallel", "parallel", "parallel", "arbitrary"),
            vmem_limit_bytes=vmem_limit),
        cost_estimate=cost,
    )(proj, proj, proj)


# ----------------------------------------------------------------------------
# Module wrapper
# ----------------------------------------------------------------------------
class MultiHeadedAttentionPallas:
    """JAX/Pallas re-implementation of the PyTorch MultiHeadedAttention forward."""

    def __init__(self, head, embedding_dim, key, dropout=0.1, dtype=jnp.float32):
        assert embedding_dim % head == 0
        self.d_k = embedding_dim // head
        self.head = head
        self.embedding_dim = embedding_dim
        self.dropout_p = dropout                 # eval-mode forward: dropout == identity

        # 4 Linear layers (q, k, v, out), nn.Linear-style uniform init.
        bound = 1.0 / math.sqrt(embedding_dim)
        keys = jax.random.split(key, 8)
        self.weights, self.biases = [], []
        for i in range(4):
            w = jax.random.uniform(keys[2 * i], (embedding_dim, embedding_dim),
                                   minval=-bound, maxval=bound, dtype=dtype)
            b = jax.random.uniform(keys[2 * i + 1], (embedding_dim,),
                                   minval=-bound, maxval=bound, dtype=dtype)
            self.weights.append(w)
            self.biases.append(b)

        # One-time weight prep (not per forward):
        #  * Q/K/V weights fused to (E, 3E) so the projections are a single GEMM.
        #  * 1/sqrt(d_k) folded into the Q projection (mathematically identical scores).
        scale = 1.0 / math.sqrt(self.d_k)
        wq, wk, wv, wo = self.weights
        bq, bk, bv, bo = self.biases
        self.w_qkv_t = jnp.concatenate([(wq * scale).T, wk.T, wv.T], axis=1)   # (E, 3E)
        self.b_qkv = jnp.concatenate([bq * scale, bk, bv])                     # (3E,)
        self.w_out_t = wo.T
        self.b_out = bo

        # TODO(synk): the flash kernel never materializes the (S, S) probabilities, so
        # self.attn is not populated; add an optional debug kernel if it is required.
        self.attn = None

    def __call__(self, query, key, value, mask=None):
        if mask is not None:
            # TODO(synk): masked_fill path not wired into the attention kernel.
            raise NotImplementedError("mask is not supported by the Pallas attention kernel")
        B, S, E = query.shape
        H, D = self.head, self.d_k

        # ---- Q/K/V projections ------------------------------------------------
        if (query is key) and (key is value):
            # self-attention: one fused GEMM reads the activations from HBM once.
            proj = pallas_linear(query.reshape(B * S, E), self.w_qkv_t, self.b_qkv)
        else:
            qp = pallas_linear(query.reshape(B * S, E), self.w_qkv_t[:, :E], self.b_qkv[:E])
            kp = pallas_linear(key.reshape(B * S, E), self.w_qkv_t[:, E:2 * E],
                               self.b_qkv[E:2 * E])
            vp = pallas_linear(value.reshape(B * S, E), self.w_qkv_t[:, 2 * E:],
                               self.b_qkv[2 * E:])
            proj = jnp.concatenate([qp, kp, vp], axis=-1)
        proj = proj.reshape(B, S, 3 * E)

        # ---- flash attention (head split via index_map; output already (B,S,H*D)) ----
        ctx = pallas_flash_attention(proj, n_heads=H, d_k=D, out_dtype=query.dtype)

        # ---- output projection -------------------------------------------------
        out = pallas_linear(ctx.reshape(B * S, E), self.w_out_t, self.b_out)
        return out.reshape(B, S, E)


# ----------------------------------------------------------------------------
# Pure-JAX reference for checking
# ----------------------------------------------------------------------------
def _reference_forward(mha, query, key, value):
    B, S, E = query.shape
    H, D = mha.head, mha.d_k
    hi = jax.lax.Precision.HIGHEST

    def lin(x, w, b):
        return jnp.dot(x.reshape(B * S, E), w.T, precision=hi) + b

    q = lin(query, mha.weights[0], mha.biases[0]).reshape(B, S, H, D).transpose(0, 2, 1, 3)
    k = lin(key, mha.weights[1], mha.biases[1]).reshape(B, S, H, D).transpose(0, 2, 1, 3)
    v = lin(value, mha.weights[2], mha.biases[2]).reshape(B, S, H, D).transpose(0, 2, 1, 3)
    scores = jnp.einsum("bhqd,bhkd->bhqk", q, k, precision=hi) / math.sqrt(D)
    p = jax.nn.softmax(scores, axis=-1)
    out = jnp.einsum("bhqk,bhkd->bhqd", p, v, precision=hi)
    out = out.transpose(0, 2, 1, 3).reshape(B * S, H * D)
    out = jnp.dot(out, mha.weights[3].T, precision=hi) + mha.biases[3]
    return out.reshape(B, S, E)


if __name__ == "__main__":
    # Small but lane-aligned shapes: d_k = 256 / 2 = 128 -> 128-lane head blocks.
    B, S, E, H = 2, 16, 256, 2

    root = jax.random.PRNGKey(0)
    k_param, k_x, k_k, k_v = jax.random.split(root, 4)

    mha = MultiHeadedAttentionPallas(head=H, embedding_dim=E, key=k_param)

    x = jax.random.normal(k_x, (B, S, E), dtype=jnp.float32)

    # Self-attention (fused QKV GEMM path).
    out = jax.block_until_ready(mha(x, x, x, mask=None))
    ref = _reference_forward(mha, x, x, x)
    assert out.shape == (B, S, E)
    assert jnp.allclose(out, ref, atol=5e-3, rtol=5e-3), float(jnp.max(jnp.abs(out - ref)))

    # Cross-attention inputs (separate projection path).
    k_in = jax.random.normal(k_k, (B, S, E), dtype=jnp.float32)
    v_in = jax.random.normal(k_v, (B, S, E), dtype=jnp.float32)
    out2 = jax.block_until_ready(mha(x, k_in, v_in, mask=None))
    ref2 = _reference_forward(mha, x, k_in, v_in)
    assert jnp.allclose(out2, ref2, atol=5e-3, rtol=5e-3), float(jnp.max(jnp.abs(out2 - ref2)))

    print("KERNEL_OK")
</pallas_src>

<mosaic_0001>
module attributes {stable_mosaic.version = 11 : i64} {
  func.func @_linear_kernel(%arg0: i32, %arg1: i32, %arg2: i32, %arg3: memref<32x256xf32, #tpu.memory_space<vmem>>, %arg4: memref<256x384xf32, #tpu.memory_space<vmem>>, %arg5: memref<1x384xf32, #tpu.memory_space<vmem>>, %arg6: memref<32x384xf32, #tpu.memory_space<vmem>>, %arg7: memref<32x384xf32, #tpu.memory_space<vmem>>) attributes {dimension_semantics = [#tpu.dimension_semantics<parallel>, #tpu.dimension_semantics<parallel>, #tpu.dimension_semantics<arbitrary>], iteration_bounds = array<i64: 1, 2, 1>, scalar_prefetch = 0 : i64, scratch_operands = 1 : i64, tpu.core_type = #tpu.core_type<tc>, window_params = [{transform_indices = @transform_0, window_bounds = array<i64: 32, 256>}, {transform_indices = @transform_1, window_bounds = array<i64: 256, 384>}, {transform_indices = @transform_2, window_bounds = array<i64: 1, 384>}, {transform_indices = @transform_3, window_bounds = array<i64: 32, 384>}]} {
    %c0_i32 = arith.constant 0 : i32
    %0 = arith.cmpi eq, %arg2, %c0_i32 : i32
    %1 = arith.extui %0 : i1 to i32
    %c0_i32_0 = arith.constant 0 : i32
    %2 = arith.cmpi ne, %1, %c0_i32_0 : i32
    scf.if %2 {
      %cst_10 = arith.constant 0.000000e+00 : f32
      %12 = vector.broadcast %cst_10 : f32 to vector<32x384xf32>
      %c0_11 = arith.constant 0 : index
      %c0_12 = arith.constant 0 : index
      %13 = vector.load %arg7[%c0_11, %c0_12] : memref<32x384xf32, #tpu.memory_space<vmem>>, vector<32x384xf32>
      tpu.vector_store %arg7[%c0_11, %c0_12], %12 {strides = array<i32>} : memref<32x384xf32, #tpu.memory_space<vmem>>, vector<32x384xf32>,
    } else {
    }
    %c0 = arith.constant 0 : index
    %c0_1 = arith.constant 0 : index
    %3 = vector.load %arg7[%c0, %c0_1] : memref<32x384xf32, #tpu.memory_space<vmem>>, vector<32x384xf32>
    %c0_2 = arith.constant 0 : index
    %c0_3 = arith.constant 0 : index
    %4 = vector.load %arg3[%c0_2, %c0_3] : memref<32x256xf32, #tpu.memory_space<vmem>>, vector<32x256xf32>
    %c0_4 = arith.constant 0 : index
    %c0_5 = arith.constant 0 : index
    %5 = vector.load %arg4[%c0_4, %c0_5] : memref<256x384xf32, #tpu.memory_space<vmem>>, vector<256x384xf32>
    %cst = arith.constant dense<0.000000e+00> : vector<32x384xf32>
    %6 = tpu.matmul %4, %5, %cst {dimension_numbers = #tpu.dot_dimension_numbers<[1], [0], [0], [1], [0, 0, 1, 1], [], []>} : vector<32x256xf32>, vector<256x384xf32>, vector<32x384xf32> -> vector<32x384xf32>
    %7 = arith.addf %3, %6 : vector<32x384xf32>
    %c0_6 = arith.constant 0 : index
    %c0_7 = arith.constant 0 : index
    %8 = vector.load %arg7[%c0_6, %c0_7] : memref<32x384xf32, #tpu.memory_space<vmem>>, vector<32x384xf32>
    tpu.vector_store %arg7[%c0_6, %c0_7], %7 {strides = array<i32>} : memref<32x384xf32, #tpu.memory_space<vmem>>, vector<32x384xf32>,
    %c0_i32_8 = arith.constant 0 : i32
    %9 = arith.cmpi eq, %arg2, %c0_i32_8 : i32
    %10 = arith.extui %9 : i1 to i32
    %c0_i32_9 = arith.constant 0 : i32
    %11 = arith.cmpi ne, %10, %c0_i32_9 : i32
    scf.if %11 {
      %c0_10 = arith.constant 0 : index
      %c0_11 = arith.constant 0 : index
      %12 = vector.load %arg7[%c0_10, %c0_11] : memref<32x384xf32, #tpu.memory_space<vmem>>, vector<32x384xf32>
      %c0_12 = arith.constant 0 : index
      %c0_13 = arith.constant 0 : index
      %13 = vector.load %arg5[%c0_12, %c0_13] : memref<1x384xf32, #tpu.memory_space<vmem>>, vector<1x384xf32>
      %14 = vector.broadcast %13 : vector<1x384xf32> to vector<32x384xf32>
      %15 = arith.addf %12, %14 : vector<32x384xf32>
      %c0_14 = arith.constant 0 : index
      %c0_15 = arith.constant 0 : index
      %16 = vector.load %arg6[%c0_14, %c0_15] : memref<32x384xf32, #tpu.memory_space<vmem>>, vector<32x384xf32>
      tpu.vector_store %arg6[%c0_14, %c0_15], %15 {strides = array<i32>} : memref<32x384xf32, #tpu.memory_space<vmem>>, vector<32x384xf32>,
    } else {
    }
    return
  }
  func.func @transform_0(%arg0: i32, %arg1: i32, %arg2: i32) -> (i32, i32) {
    %c0_i32 = arith.constant 0 : i32
    return %arg0, %arg2 : i32, i32
  }
  func.func @transform_1(%arg0: i32, %arg1: i32, %arg2: i32) -> (i32, i32) {
    %c0_i32 = arith.constant 0 : i32
    return %arg2, %arg1 : i32, i32
  }
  func.func @transform_2(%arg0: i32, %arg1: i32, %arg2: i32) -> (i32, i32) {
    %c0_i32 = arith.constant 0 : i32
    %c0_i32_0 = arith.constant 0 : i32
    return %c0_i32, %arg1 : i32, i32
  }
  func.func @transform_3(%arg0: i32, %arg1: i32, %arg2: i32) -> (i32, i32) {
    %c0_i32 = arith.constant 0 : i32
    return %arg0, %arg1 : i32, i32
  }
}

</mosaic_0001>

<llo_original>
// kernel: tpu_custom_call.1
$region0: #{tpu_custom_call.1}
  #allocation0 [shape = 'u32[]', space=smem, size = 0x4, offset = 0x4, fixed_abs, tag = 'smem constant byte address 0x4 - core index']
  #allocation1 [shape = 'u32[72,128]{1,0:T(1,128)}', space=vmem, size = 0x9000, scoped, tag = 'internal scratch']
  #allocation2 [shape = 'f32[32,384]{1,0:T(8,128)}', space=vmem, size = 0xc000, scoped, tag = 'scratch operand']
  %s0 = inlined_call_operand.hbm [shape: f32[32,256], index: 0, kind: input, shape index: {}]
  %s1 = inlined_call_operand.hbm [shape: f32[256,768], index: 1, kind: input, shape index: {}]
  %s2 = inlined_call_operand.hbm [shape: f32[1,768], index: 2, kind: input, shape index: {}]
  %s3 = inlined_call_operand.hbm [shape: f32[32,768], index: 3, kind: output, shape index: {}]
  %s4 = sld [smem:[#allocation0]]
  $region65: #{tpu_custom_call.1} parent=0
    _
  %s6 = ssub.s32 1, %s4
  %s7 = scalar_select 0, %s6, %s4
  $region1: #{tpu_custom_call.1} parent=0
    #allocation3 [shape = 'u8[32768]{0}', space=vmem, size = 0x8000, scoped, tag = 'input window, operand 0, single buffered']
    #allocation4 [shape = 's32[2]{0}', space=sflag, size = 0x8, scoped, tag = 'scoped memory for tpu_custom_call.1']
    #allocation5 [shape = 's32[2]{0}', space=sflag, size = 0x8, scoped, tag = 'scoped memory for tpu_custom_call.1']
    #allocation6 [shape = 'u8[786432]{0}', space=vmem, size = 0xc0000, scoped, tag = 'input window, operand 1']
    #allocation7 [shape = 's32[2]{0}', space=sflag, size = 0x8, scoped, tag = 'scoped memory for tpu_custom_call.1']
    #allocation8 [shape = 'u8[3072]{0}', space=vmem, size = 0xc00, scoped, tag = 'input window, operand 2']
    #allocation9 [shape = 'u8[98304]{0}', space=vmem, size = 0x18000, scoped, tag = 'output window, operand 0']
    %8 = vsyncpa [#allocation4], 0
    %9 = vsyncpa [#allocation7], 0
    %s10 = scalar_lea.sflag [#allocation7], 1
    %11 = vsyncpa %s10, 0
    %12 = vsyncpa [#allocation5], 0
    %s13 = scalar_lea.sflag [#allocation5], 1
    %14 = vsyncpa %s13, 0
    loop: start=0, step=1, limit=4
    $region2: #{tpu_custom_call.1} parent=1 // loop_pre_header
      _
    $region3: #{tpu_custom_call.1} parent=1 // loop_header
      %s16 = sphi 0, %s20
      %p17 = scmp.ge.s32.totalorder %s16, 4
      %s23 = sphi 0, %s42
      %s24 = sphi 0, %s38
      %s25 = sphi 0, %s34
      %s26 = sphi 0, %s23
      %s27 = sphi 0, %s24
      %s28 = sphi 0, %s25
      %s29 = sphi 0, %s26
      %s30 = sphi 0, %s27
      %s31 = sphi 0, %s28
      %s47 = sphi 0, %s49
      %s50 = sphi 0, %s47
      %s51 = sphi 0, %s50
      %s67 = sphi 0, %s51
      %s75 = sphi 0, %s77
      %s78 = sphi 0, %s75
      %s79 = sphi 0, %s78
      %s95 = sphi 0, %s79
      %s101 = sphi 0, %s103
      %s104 = sphi 0, %s101
      %s105 = sphi 0, %s104
      %s121 = sphi 0, %s105
      %s129 = sphi 0, %s131
      %s132 = sphi 0, %s129
      %s133 = sphi 0, %s132
      %s149 = sphi 0, %s133
    $region4: #{tpu_custom_call.1} parent=1 // loop_header_branch
      %19 = sbr.rel (%p17) target = $region8
    $region5: #{tpu_custom_call.1} parent=1 // loop_body
      %s21 = ssub.s32 %s16, 1
      %s22 = ssub.s32 %s16, 2
      %s32 = sadd.s32 1, %s25
      %p33 = scmp.ge.s32.totalorder %s32, 1
      %s34 = scalar_select %p33, 0, %s32
      %s35 = sadd.s32 1, %s24
      %s36 = scalar_select %p33, %s35, %s24
      %p37 = scmp.ge.s32.totalorder %s36, 2
      %s38 = scalar_select %p37, 0, %s36
      %s39 = sadd.s32 1, %s23
      %s40 = scalar_select %p37, %s39, %s23
      %p41 = scmp.ge.s32.totalorder %s40, 1
      %s42 = scalar_select %p41, 0, %s40
      %s43 = ssub.s32 %s23, %s42
      %s44 = ssub.s32 %s25, %s34
      %s45 = sor.u32 %s43, %s44
      %p46 = scmp.eq.s32.totalorder %s45, 0
      %s48 = sadd.s32 %s47, 1
      %s49 = scalar_select %p46, %s47, %s48
      %p52 = pneg %p46
      %p53 = scmp.eq.s32.totalorder %s16, 1
      %p54 = por %p52, %p53
      %p55 = scmp.ne.s32.totalorder %s47, %s50
      %p56 = scmp.eq.s32.totalorder %s16, 0
      %p57 = por %p55, %p56
      %p58 = scmp.ne.s32.totalorder %s47, %s50
      %p59 = scmp.eq.s32.totalorder %s21, 1
      %p60 = por %p58, %p59
      %p61 = scmp.ne.s32.totalorder %s50, %s51
      %p62 = scmp.eq.s32.totalorder %s21, 0
      %p63 = por %p61, %p62
      %p64 = scmp.ne.s32.totalorder %s50, %s51
      %p65 = scmp.eq.s32.totalorder %s22, 1
      %p66 = por %p64, %p65
      %p68 = scmp.ne.s32.totalorder %s51, %s67
      %p69 = scmp.eq.s32.totalorder %s22, 0
      %p70 = por %p68, %p69
      %s71 = ssub.s32 %s25, %s34
      %s72 = ssub.s32 %s24, %s38
      %s73 = sor.u32 %s71, %s72
      %p74 = scmp.eq.s32.totalorder %s73, 0
      %s76 = sadd.s32 %s75, 1
      %s77 = scalar_select %p74, %s75, %s76
      %p80 = pneg %p74
      %p81 = scmp.eq.s32.totalorder %s16, 1
      %p82 = por %p80, %p81
      %p83 = scmp.ne.s32.totalorder %s75, %s78
      %p84 = scmp.eq.s32.totalorder %s16, 0
      %p85 = por %p83, %p84
      %p86 = scmp.ne.s32.totalorder %s75, %s78
      %p87 = scmp.eq.s32.totalorder %s21, 1
      %p88 = por %p86, %p87
      %p89 = scmp.ne.s32.totalorder %s78, %s79
      %p90 = scmp.eq.s32.totalorder %s21, 0
      %p91 = por %p89, %p90
      %p92 = scmp.ne.s32.totalorder %s78, %s79
      %p93 = scmp.eq.s32.totalorder %s22, 1
      %p94 = por %p92, %p93
      %p96 = scmp.ne.s32.totalorder %s79, %s95
      %p97 = scmp.eq.s32.totalorder %s22, 0
      %p98 = por %p96, %p97
      %s99 = ssub.s32 %s24, %s38
      %p100 = scmp.eq.s32.totalorder %s99, 0
      %s102 = sadd.s32 %s101, 1
      %s103 = scalar_select %p100, %s101, %s102
      %p106 = pneg %p100
      %p107 = scmp.eq.s32.totalorder %s16, 1
      %p108 = por %p106, %p107
      %p109 = scmp.ne.s32.totalorder %s101, %s104
      %p110 = scmp.eq.s32.totalorder %s16, 0
      %p111 = por %p109, %p110
      %p112 = scmp.ne.s32.totalorder %s101, %s104
      %p113 = scmp.eq.s32.totalorder %s21, 1
      %p114 = por %p112, %p113
      %p115 = scmp.ne.s32.totalorder %s104, %s105
      %p116 = scmp.eq.s32.totalorder %s21, 0
      %p117 = por %p115, %p116
      %p118 = scmp.ne.s32.totalorder %s104, %s105
      %p119 = scmp.eq.s32.totalorder %s22, 1
      %p120 = por %p118, %p119
      %p122 = scmp.ne.s32.totalorder %s105, %s121
      %p123 = scmp.eq.s32.totalorder %s22, 0
      %p124 = por %p122, %p123
      %s125 = ssub.s32 %s23, %s42
      %s126 = ssub.s32 %s24, %s38
      %s127 = sor.u32 %s125, %s126
      %p128 = scmp.eq.s32.totalorder %s127, 0
      %s130 = sadd.s32 %s129, 1
      %s131 = scalar_select %p128, %s129, %s130
      %p134 = pneg %p128
      %p135 = scmp.eq.s32.totalorder %s16, 1
      %p136 = por %p134, %p135
      %p137 = scmp.ne.s32.totalorder %s129, %s132
      %p138 = scmp.eq.s32.totalorder %s16, 0
      %p139 = por %p137, %p138
      %p140 = scmp.ne.s32.totalorder %s129, %s132
      %p141 = scmp.eq.s32.totalorder %s21, 1
      %p142 = por %p140, %p141
      %p143 = scmp.ne.s32.totalorder %s132, %s133
      %p144 = scmp.eq.s32.totalorder %s21, 0
      %p145 = por %p143, %p144
      %p146 = scmp.ne.s32.totalorder %s132, %s133
      %p147 = scmp.eq.s32.totalorder %s22, 1
      %p148 = por %p146, %p147
      %p150 = scmp.ne.s32.totalorder %s133, %s149
      %p151 = scmp.eq.s32.totalorder %s22, 0
      %p152 = por %p150, %p151
      %p153 = scmp.le.s32.totalorder 1, %s16
      %p154 = scmp.lt.s32.totalorder %s16, 3
      %p155 = pnand %p153, %p154
      %p156 = pneg %p155
      // Predicated region
      $region9: #{tpu_custom_call.1} parent=5 // pred_check
        _
      $region10: #{tpu_custom_call.1} parent=5 // pred_check_branch
        %158 = sbr.rel (%p155) target = $region12
      $region11: #{tpu_custom_call.1} parent=5 // pred_region
        %s159 = ssub.s32 %s16, 1
        // Predicated region
        $region13: #{tpu_custom_call.1} parent=11 // pred_check
          %p160 = pneg %p63
        $region14: #{tpu_custom_call.1} parent=11 // pred_check_branch
          %162 = sbr.rel (%p160) target = $region16
        $region15: #{tpu_custom_call.1} parent=11 // pred_region
          %s163 = smul.u32 4, %s26
          %s164 = smul.u32 2, %s28
          %166 = vsyncadd [#allocation4], 0
          %s167 = smul.addr %s163, 2
          %s168 = sadd.s32 %s164, %s167
          %s169 = smul.addr %s168, 8
          %s170 = scalar_lea.hbm %s0, %s169
          %s171 = sshll.u32 %s170, 4
          %s172 = int_to_ptr.hbm [resolvable:$true] %s171
          %s173 = sshll.u32 [#allocation3], 4
          %s174 = int_to_ptr.vmem [resolvable:$true] %s173
          %179 = dma.hbm_to_vmem [thread:$0]  %s172, 1024, %s174, [#allocation4], 256, 256, 16
        $region16: #{tpu_custom_call.1} parent=11 // pred_fallthru
          _
      $region12: #{tpu_custom_call.1} parent=5 // pred_fallthru
        _
      %p180 = scmp.lt.s32.totalorder %s16, 2
      // Predicated region
      $region17: #{tpu_custom_call.1} parent=5 // pred_check
        %p181 = pneg %p180
      $region18: #{tpu_custom_call.1} parent=5 // pred_check_branch
        %183 = sbr.rel (%p181) target = $region20
      $region19: #{tpu_custom_call.1} parent=5 // pred_region
        // Predicated region
        $region21: #{tpu_custom_call.1} parent=19 // pred_check
          %p184 = pneg %p85
        $region22: #{tpu_custom_call.1} parent=19 // pred_check_branch
          %186 = sbr.rel (%p184) target = $region24
        $region23: #{tpu_custom_call.1} parent=19 // pred_region
          %s187 = sand.u32 %s16, 1
          %s188 = scalar_lea.sflag [#allocation7], %s187
          %s189 = sand.u32 %s75, 1
          %s190 = smul.addr %s189, 768
          %s191 = scalar_lea.vmem [#allocation6], %s190
          %s192 = smul.u32 32, %s25
          %s193 = smul.u32 3, %s24
          %195 = vsyncadd %s188, 0
          %s196 = smul.addr %s192, 6
          %s197 = sadd.s32 %s193, %s196
          %s198 = smul.addr %s197, 8
          %s199 = scalar_lea.hbm %s1, %s198
          %s200 = sshll.u32 %s199, 4
          %s201 = int_to_ptr.hbm [resolvable:$true] %s200
          %s202 = sshll.u32 %s191, 4
          %s203 = int_to_ptr.vmem [resolvable:$true] %s202
          %208 = dma.hbm_to_vmem [thread:$0]  %s201, 12288, %s203, %s188, 768, 384, 24
        $region24: #{tpu_custom_call.1} parent=19 // pred_fallthru
          _
        // Predicated region
        $region25: #{tpu_custom_call.1} parent=19 // pred_check
          %p209 = pneg %p111
        $region26: #{tpu_custom_call.1} parent=19 // pred_check_branch
          %211 = sbr.rel (%p209) target = $region28
        $region27: #{tpu_custom_call.1} parent=19 // pred_region
          %s212 = sand.u32 %s16, 1
          %s213 = scalar_lea.sflag [#allocation7], %s212
          %s214 = sand.u32 %s101, 1
          %s215 = smul.addr %s214, 3
          %s216 = scalar_lea.vmem [#allocation8], %s215
          %s217 = smul.u32 3, %s24
          %219 = vsyncadd %s213, 0
          %s220 = scalar_lea.hbm %s2, %s217
          %s222 = sshll.u32 %s220, 4
          %s223 = int_to_ptr.hbm [resolvable:$true] %s222
          %s224 = sshll.u32 %s216, 4
          %s225 = int_to_ptr.vmem [resolvable:$true] %s224
          %227 = dma.hbm_to_vmem [thread:$0]  %s223, 48, %s225, %s213
        $region28: #{tpu_custom_call.1} parent=19 // pred_fallthru
          _
      $region20: #{tpu_custom_call.1} parent=5 // pred_fallthru
        _
      %p228 = scmp.le.s32.totalorder 1, %s16
      %p229 = scmp.lt.s32.totalorder %s16, 3
      %p230 = pnand %p228, %p229
      %p231 = pneg %p230
      // Predicated region
      $region29: #{tpu_custom_call.1} parent=5 // pred_check
        _
      $region30: #{tpu_custom_call.1} parent=5 // pred_check_branch
        %233 = sbr.rel (%p230) target = $region32
      $region31: #{tpu_custom_call.1} parent=5 // pred_region
        %s234 = ssub.s32 %s16, 1
        // Predicated region
        $region33: #{tpu_custom_call.1} parent=31 // pred_check
          %p235 = pneg %p63
        $region34: #{tpu_custom_call.1} parent=31 // pred_check_branch
          %237 = sbr.rel (%p235) target = $region36
        $region35: #{tpu_custom_call.1} parent=31 // pred_region
          %239 = dma.done [#allocation4], 1024
        $region36: #{tpu_custom_call.1} parent=31 // pred_fallthru
          _
        %s240 = sand.u32 %s21, 1
        %s241 = scalar_lea.sflag [#allocation7], %s240
        %s242 = sand.u32 %s78, 1
        %s243 = smul.addr %s242, 768
        %s244 = scalar_lea.vmem [#allocation6], %s243
        // Predicated region
        $region37: #{tpu_custom_call.1} parent=31 // pred_check
          %p245 = pneg %p91
        $region38: #{tpu_custom_call.1} parent=31 // pred_check_branch
          %247 = sbr.rel (%p245) target = $region40
        $region39: #{tpu_custom_call.1} parent=31 // pred_region
          %249 = dma.done %s241, 12288
        $region40: #{tpu_custom_call.1} parent=31 // pred_fallthru
          _
        %s250 = sand.u32 %s21, 1
        %s251 = scalar_lea.sflag [#allocation7], %s250
        %s252 = sand.u32 %s104, 1
        %s253 = smul.addr %s252, 3
        %s254 = scalar_lea.vmem [#allocation8], %s253
        // Predicated region
        $region41: #{tpu_custom_call.1} parent=31 // pred_check
          %p255 = pneg %p117
        $region42: #{tpu_custom_call.1} parent=31 // pred_check_branch
          %257 = sbr.rel (%p255) target = $region44
        $region43: #{tpu_custom_call.1} parent=31 // pred_region
          %259 = dma.done %s251, 48
        $region44: #{tpu_custom_call.1} parent=31 // pred_fallthru
          _
        %p260 = pneg %p63
        %p261 = pneg %p60
        %s262 = sand.u32 %s21, 1
        %s263 = scalar_lea.sflag [#allocation7], %s262
        %s264 = sand.u32 %s78, 1
        %s265 = smul.addr %s264, 768
        %s266 = scalar_lea.vmem [#allocation6], %s265
        %p267 = pneg %p91
        %p268 = pneg %p88
        %s269 = sand.u32 %s21, 1
        %s270 = scalar_lea.sflag [#allocation7], %s269
        %s271 = sand.u32 %s104, 1
        %s272 = smul.addr %s271, 3
        %s273 = scalar_lea.vmem [#allocation8], %s272
        %p274 = pneg %p117
        %p275 = pneg %p114
        %p276 = pneg %p145
        %p277 = pneg %p142
        %s278 = sand.u32 %s132, 1
        %s279 = scalar_lea.sflag [#allocation5], %s278
        %s280 = sand.u32 %s132, 1
        %s281 = smul.addr %s280, 96
        %s282 = scalar_lea.vmem [#allocation9], %s281
        %s283 = smul.u32 4, %s26
        %s284 = smul.u32 2, %s28
        %s285 = smul.u32 32, %s28
        %s286 = smul.u32 3, %s27
        %s287 = smul.u32 3, %s27
        %s288 = smul.u32 4, %s26
        %s289 = smul.u32 3, %s27
        %p290 = scmp.eq.s32.totalorder %s28, 0
        // Predicated region
        $region45: #{tpu_custom_call.1} parent=31 // pred_check
          %p291 = pneg %p290
        $region46: #{tpu_custom_call.1} parent=31 // pred_check_branch
          %293 = sbr.rel (%p291) target = $region48
        $region47: #{tpu_custom_call.1} parent=31 // pred_region
          %294 = vst [vmem:[#allocation2] sm:$0xff] 0.0
          %295 = vst [vmem:[#allocation2 + $0x8] sm:$0xff] 0.0
          %296 = vst [vmem:[#allocation2 + $0x10] sm:$0xff] 0.0
          %297 = vst [vmem:[#allocation2 + $0x18] sm:$0xff] 0.0
          %298 = vst [vmem:[#allocation2 + $0x20] sm:$0xff] 0.0
          %299 = vst [vmem:[#allocation2 + $0x28] sm:$0xff] 0.0
          %300 = vst [vmem:[#allocation2 + $0x30] sm:$0xff] 0.0
          %301 = vst [vmem:[#allocation2 + $0x38] sm:$0xff] 0.0
          %302 = vst [vmem:[#allocation2 + $0x40] sm:$0xff] 0.0
          %303 = vst [vmem:[#allocation2 + $0x48] sm:$0xff] 0.0
          %304 = vst [vmem:[#allocation2 + $0x50] sm:$0xff] 0.0
          %305 = vst [vmem:[#allocation2 + $0x58] sm:$0xff] 0.0
        $region48: #{tpu_custom_call.1} parent=31 // pred_fallthru
          _
        %v306 = vld [vmem:[#allocation2] sm:$0xff]
        %v307 = vld [vmem:[#allocation2 + $0x8] sm:$0xff]
        %v308 = vld [vmem:[#allocation2 + $0x10] sm:$0xff]
        %v309 = vld [vmem:[#allocation2 + $0x18] sm:$0xff]
        %v310 = vld [vmem:[#allocation2 + $0x20] sm:$0xff]
        %v311 = vld [vmem:[#allocation2 + $0x28] sm:$0xff]
        %v312 = vld [vmem:[#allocation2 + $0x30] sm:$0xff]
        %v313 = vld [vmem:[#allocation2 + $0x38] sm:$0xff]
        %v314 = vld [vmem:[#allocation2 + $0x40] sm:$0xff]
        %v315 = vld [vmem:[#allocation2 + $0x48] sm:$0xff]
        %v316 = vld [vmem:[#allocation2 + $0x50] sm:$0xff]
        %v317 = vld [vmem:[#allocation2 + $0x58] sm:$0xff]
        %v318 = vld [vmem:[#allocation3] sm:$0xff]
        %v319 = vld [vmem:[#allocation3 + $0x8] sm:$0xff]
        %v320 = vld [vmem:[#allocation3 + $0x10] sm:$0xff]
        %v321 = vld [vmem:[#allocation3 + $0x18] sm:$0xff]
        %v322 = vld [vmem:[#allocation3 + $0x20] sm:$0xff]
        %v323 = vld [vmem:[#allocation3 + $0x28] sm:$0xff]
        %v324 = vld [vmem:[#allocation3 + $0x30] sm:$0xff]
        %v325 = vld [vmem:[#allocation3 + $0x38] sm:$0xff]
        %v326 = vld [vmem:[%s244] sm:$0xff]
        %v327 = vld [vmem:[%s244 + $0x8] sm:$0xff]
        %v328 = vld [vmem:[%s244 + $0x10] sm:$0xff]
        %v329 = vld [vmem:[%s244 + $0x18] sm:$0xff]
        %v330 = vld [vmem:[%s244 + $0x20] sm:$0xff]
        %v331 = vld [vmem:[%s244 + $0x28] sm:$0xff]
        %v332 = vld [vmem:[%s244 + $0x30] sm:$0xff]
        %v333 = vld [vmem:[%s244 + $0x38] sm:$0xff]
        %v334 = vld [vmem:[%s244 + $0x40] sm:$0xff]
        %v335 = vld [vmem:[%s244 + $0x48] sm:$0xff]
        %v336 = vld [vmem:[%s244 + $0x50] sm:$0xff]
        %v337 = vld [vmem:[%s244 + $0x58] sm:$0xff]
        %v338 = vld [vmem:[%s244 + $0x60] sm:$0xff]
        %v339 = vld [vmem:[%s244 + $0x68] sm:$0xff]
        %v340 = vld [vmem:[%s244 + $0x70] sm:$0xff]
        %v341 = vld [vmem:[%s244 + $0x78] sm:$0xff]
        %v342 = vld [vmem:[%s244 + $0x80] sm:$0xff]
        %v343 = vld [vmem:[%s244 + $0x88] sm:$0xff]
        %v344 = vld [vmem:[%s244 + $0x90] sm:$0xff]
        %v345 = vld [vmem:[%s244 + $0x98] sm:$0xff]
        %v346 = vld [vmem:[%s244 + $0xa0] sm:$0xff]
        %v347 = vld [vmem:[%s244 + $0xa8] sm:$0xff]
        %v348 = vld [vmem:[%s244 + $0xb0] sm:$0xff]
        %v349 = vld [vmem:[%s244 + $0xb8] sm:$0xff]
        %v350 = vld [vmem:[%s244 + $0xc0] sm:$0xff]
        %v351 = vld [vmem:[%s244 + $0xc8] sm:$0xff]
        %v352 = vld [vmem:[%s244 + $0xd0] sm:$0xff]
        %v353 = vld [vmem:[%s244 + $0xd8] sm:$0xff]
        %v354 = vld [vmem:[%s244 + $0xe0] sm:$0xff]
        %v355 = vld [vmem:[%s244 + $0xe8] sm:$0xff]
        %v356 = vld [vmem:[%s244 + $0xf0] sm:$0xff]
        %v357 = vld [vmem:[%s244 + $0xf8] sm:$0xff]
        %v358 = vld [vmem:[%s244 + $0x100] sm:$0xff]
        %v359 = vld [vmem:[%s244 + $0x108] sm:$0xff]
        %v360 = vld [vmem:[%s244 + $0x110] sm:$0xff]
        %v361 = vld [vmem:[%s244 + $0x118] sm:$0xff]
        %v362 = vld [vmem:[%s244 + $0x120] sm:$0xff]
        %v363 = vld [vmem:[%s244 + $0x128] sm:$0xff]
        %v364 = vld [vmem:[%s244 + $0x130] sm:$0xff]
        %v365 = vld [vmem:[%s244 + $0x138] sm:$0xff]
        %v366 = vld [vmem:[%s244 + $0x140] sm:$0xff]
        %v367 = vld [vmem:[%s244 + $0x148] sm:$0xff]
        %v368 = vld [vmem:[%s244 + $0x150] sm:$0xff]
        %v369 = vld [vmem:[%s244 + $0x158] sm:$0xff]
        %v370 = vld [vmem:[%s244 + $0x160] sm:$0xff]
        %v371 = vld [vmem:[%s244 + $0x168] sm:$0xff]
        %v372 = vld [vmem:[%s244 + $0x170] sm:$0xff]
        %v373 = vld [vmem:[%s244 + $0x178] sm:$0xff]
        %v374 = vld [vmem:[%s244 + $0x180] sm:$0xff]
        %v375 = vld [vmem:[%s244 + $0x188] sm:$0xff]
        %v376 = vld [vmem:[%s244 + $0x190] sm:$0xff]
        %v377 = vld [vmem:[%s244 + $0x198] sm:$0xff]
        %v378 = vld [vmem:[%s244 + $0x1a0] sm:$0xff]
        %v379 = vld [vmem:[%s244 + $0x1a8] sm:$0xff]
        %v380 = vld [vmem:[%s244 + $0x1b0] sm:$0xff]
        %v381 = vld [vmem:[%s244 + $0x1b8] sm:$0xff]
        %v382 = vld [vmem:[%s244 + $0x1c0] sm:$0xff]
        %v383 = vld [vmem:[%s244 + $0x1c8] sm:$0xff]
        %v384 = vld [vmem:[%s244 + $0x1d0] sm:$0xff]
        %v385 = vld [vmem:[%s244 + $0x1d8] sm:$0xff]
        %v386 = vld [vmem:[%s244 + $0x1e0] sm:$0xff]
        %v387 = vld [vmem:[%s244 + $0x1e8] sm:$0xff]
        %v388 = vld [vmem:[%s244 + $0x1f0] sm:$0xff]
        %v389 = vld [vmem:[%s244 + $0x1f8] sm:$0xff]
        %v390 = vld [vmem:[%s244 + $0x200] sm:$0xff]
        %v391 = vld [vmem:[%s244 + $0x208] sm:$0xff]
        %v392 = vld [vmem:[%s244 + $0x210] sm:$0xff]
        %v393 = vld [vmem:[%s244 + $0x218] sm:$0xff]
        %v394 = vld [vmem:[%s244 + $0x220] sm:$0xff]
        %v395 = vld [vmem:[%s244 + $0x228] sm:$0xff]
        %v396 = vld [vmem:[%s244 + $0x230] sm:$0xff]
        %v397 = vld [vmem:[%s244 + $0x238] sm:$0xff]
        %v398 = vld [vmem:[%s244 + $0x240] sm:$0xff]
        %v399 = vld [vmem:[%s244 + $0x248] sm:$0xff]
        %v400 = vld [vmem:[%s244 + $0x250] sm:$0xff]
        %v401 = vld [vmem:[%s244 + $0x258] sm:$0xff]
        %v402 = vld [vmem:[%s244 + $0x260] sm:$0xff]
        %v403 = vld [vmem:[%s244 + $0x268] sm:$0xff]
        %v404 = vld [vmem:[%s244 + $0x270] sm:$0xff]
        %v405 = vld [vmem:[%s244 + $0x278] sm:$0xff]
        %v406 = vld [vmem:[%s244 + $0x280] sm:$0xff]
        %v407 = vld [vmem:[%s244 + $0x288] sm:$0xff]
        %v408 = vld [vmem:[%s244 + $0x290] sm:$0xff]
        %v409 = vld [vmem:[%s244 + $0x298] sm:$0xff]
        %v410 = vld [vmem:[%s244 + $0x2a0] sm:$0xff]
        %v411 = vld [vmem:[%s244 + $0x2a8] sm:$0xff]
        %v412 = vld [vmem:[%s244 + $0x2b0] sm:$0xff]
        %v413 = vld [vmem:[%s244 + $0x2b8] sm:$0xff]
        %v414 = vld [vmem:[%s244 + $0x2c0] sm:$0xff]
        %v415 = vld [vmem:[%s244 + $0x2c8] sm:$0xff]
        %v416 = vld [vmem:[%s244 + $0x2d0] sm:$0xff]
        %v417 = vld [vmem:[%s244 + $0x2d8] sm:$0xff]
        %v418 = vld [vmem:[%s244 + $0x2e0] sm:$0xff]
        %v419 = vld [vmem:[%s244 + $0x2e8] sm:$0xff]
        %v420 = vld [vmem:[%s244 + $0x2f0] sm:$0xff]
        %v421 = vld [vmem:[%s244 + $0x2f8] sm:$0xff]
        %422 = vmatpush.msra.mxu0 %v371
        %423 = vmatpush.msra.mxu0 %v368
        %424 = vmatpush.msra.mxu0 %v365
        %425 = vmatpush.msra.mxu0 %v362
        %426 = vmatpush.msra.mxu0 %v359
        %427 = vmatpush.msra.mxu0 %v356
        %428 = vmatpush.msra.mxu0 %v353
        %429 = vmatpush.msra.mxu0 %v350
        %430 = vmatpush.msra.mxu0 %v347
        %431 = vmatpush.msra.mxu0 %v344
        %432 = vmatpush.msra.mxu0 %v341
        %433 = vmatpush.msra.mxu0 %v338
        %434 = vmatpush.msra.mxu0 %v335
        %435 = vmatpush.msra.mxu0 %v332
        %436 = vmatpush.msra.mxu0 %v329
        %437 = vmatpush.msra.mxu0 %v326
        %438 = vmatmul.f32.gmra.mxu0 %v318
        %v439 = vpop.f32.mrf.mxu0
        %v440 = vadd.f32 0.0, %v439
        %441 = vmatmul.f32.gmra.mxu0 %v320
        %v442 = vpop.f32.mrf.mxu0
        %v443 = vadd.f32 0.0, %v442
        %444 = vmatmul.f32.gmra.mxu0 %v322
        %v445 = vpop.f32.mrf.mxu0
        %v446 = vadd.f32 0.0, %v445
        %447 = vmatmul.f32.gmra.mxu0 %v324
        %v448 = vpop.f32.mrf.mxu0
        %v449 = vadd.f32 0.0, %v448
        %450 = vdwg.mxu0
        %451 = vmatpush.msra.mxu0 %v419
        %452 = vmatpush.msra.mxu0 %v416
        %453 = vmatpush.msra.mxu0 %v413
        %454 = vmatpush.msra.mxu0 %v410
        %455 = vmatpush.msra.mxu0 %v407
        %456 = vmatpush.msra.mxu0 %v404
        %457 = vmatpush.msra.mxu0 %v401
        %458 = vmatpush.msra.mxu0 %v398
        %459 = vmatpush.msra.mxu0 %v395
        %460 = vmatpush.msra.mxu0 %v392
        %461 = vmatpush.msra.mxu0 %v389
        %462 = vmatpush.msra.mxu0 %v386
        %463 = vmatpush.msra.mxu0 %v383
        %464 = vmatpush.msra.mxu0 %v380
        %465 = vmatpush.msra.mxu0 %v377
        %466 = vmatpush.msra.mxu0 %v374
        %467 = vmatmul.f32.gmra.mxu0 %v319
        %v468 = vpop.f32.mrf.mxu0
        %v469 = vadd.f32 %v440, %v468
        %470 = vmatmul.f32.gmra.mxu0 %v321
        %v471 = vpop.f32.mrf.mxu0
        %v472 = vadd.f32 %v443, %v471
        %473 = vmatmul.f32.gmra.mxu0 %v323
        %v474 = vpop.f32.mrf.mxu0
        %v475 = vadd.f32 %v446, %v474
        %476 = vmatmul.f32.gmra.mxu0 %v325
        %v477 = vpop.f32.mrf.mxu0
        %v478 = vadd.f32 %v449, %v477
        %479 = vdwg.mxu0
        %480 = vmatpush.msra.mxu0 %v372
        %481 = vmatpush.msra.mxu0 %v369
        %482 = vmatpush.msra.mxu0 %v366
        %483 = vmatpush.msra.mxu0 %v363
        %484 = vmatpush.msra.mxu0 %v360
        %485 = vmatpush.msra.mxu0 %v357
        %486 = vmatpush.msra.mxu0 %v354
        %487 = vmatpush.msra.mxu0 %v351
        %488 = vmatpush.msra.mxu0 %v348
        %489 = vmatpush.msra.mxu0 %v345
        %490 = vmatpush.msra.mxu0 %v342
        %491 = vmatpush.msra.mxu0 %v339
        %492 = vmatpush.msra.mxu0 %v336
        %493 = vmatpush.msra.mxu0 %v333
        %494 = vmatpush.msra.mxu0 %v330
        %495 = vmatpush.msra.mxu0 %v327
        %496 = vmatmul.f32.gmra.mxu0 %v318
        %v497 = vpop.f32.mrf.mxu0
        %v498 = vadd.f32 0.0, %v497
        %499 = vmatmul.f32.gmra.mxu0 %v320
        %v500 = vpop.f32.mrf.mxu0
        %v501 = vadd.f32 0.0, %v500
        %502 = vmatmul.f32.gmra.mxu0 %v322
        %v503 = vpop.f32.mrf.mxu0
        %v504 = vadd.f32 0.0, %v503
        %505 = vmatmul.f32.gmra.mxu0 %v324
        %v506 = vpop.f32.mrf.mxu0
        %v507 = vadd.f32 0.0, %v506
        %508 = vdwg.mxu0
        %509 = vmatpush.msra.mxu0 %v420
        %510 = vmatpush.msra.mxu0 %v417
        %511 = vmatpush.msra.mxu0 %v414
        %512 = vmatpush.msra.mxu0 %v411
        %513 = vmatpush.msra.mxu0 %v408
        %514 = vmatpush.msra.mxu0 %v405
        %515 = vmatpush.msra.mxu0 %v402
        %516 = vmatpush.msra.mxu0 %v399
        %517 = vmatpush.msra.mxu0 %v396
        %518 = vmatpush.msra.mxu0 %v393
        %519 = vmatpush.msra.mxu0 %v390
        %520 = vmatpush.msra.mxu0 %v387
        %521 = vmatpush.msra.mxu0 %v384
        %522 = vmatpush.msra.mxu0 %v381
        %523 = vmatpush.msra.mxu0 %v378
        %524 = vmatpush.msra.mxu0 %v375
        %525 = vmatmul.f32.gmra.mxu0 %v319
        %v526 = vpop.f32.mrf.mxu0
        %v527 = vadd.f32 %v498, %v526
        %528 = vmatmul.f32.gmra.mxu0 %v321
        %v529 = vpop.f32.mrf.mxu0
        %v530 = vadd.f32 %v501, %v529
        %531 = vmatmul.f32.gmra.mxu0 %v323
        %v532 = vpop.f32.mrf.mxu0
        %v533 = vadd.f32 %v504, %v532
        %534 = vmatmul.f32.gmra.mxu0 %v325
        %v535 = vpop.f32.mrf.mxu0
        %v536 = vadd.f32 %v507, %v535
        %537 = vdwg.mxu0
        %538 = vmatpush.msra.mxu0 %v373
        %539 = vmatpush.msra.mxu0 %v370
        %540 = vmatpush.msra.mxu0 %v367
        %541 = vmatpush.msra.mxu0 %v364
        %542 = vmatpush.msra.mxu0 %v361
        %543 = vmatpush.msra.mxu0 %v358
        %544 = vmatpush.msra.mxu0 %v355
        %545 = vmatpush.msra.mxu0 %v352
        %546 = vmatpush.msra.mxu0 %v349
        %547 = vmatpush.msra.mxu0 %v346
        %548 = vmatpush.msra.mxu0 %v343
        %549 = vmatpush.msra.mxu0 %v340
        %550 = vmatpush.msra.mxu0 %v337
        %551 = vmatpush.msra.mxu0 %v334
        %552 = vmatpush.msra.mxu0 %v331
        %553 = vmatpush.msra.mxu0 %v328
        %554 = vmatmul.f32.gmra.mxu0 %v318
        %v555 = vpop.f32.mrf.mxu0
        %v556 = vadd.f32 0.0, %v555
        %557 = vmatmul.f32.gmra.mxu0 %v320
        %v558 = vpop.f32.mrf.mxu0
        %v559 = vadd.f32 0.0, %v558
        %560 = vmatmul.f32.gmra.mxu0 %v322
        %v561 = vpop.f32.mrf.mxu0
        %v562 = vadd.f32 0.0, %v561
        %563 = vmatmul.f32.gmra.mxu0 %v324
        %v564 = vpop.f32.mrf.mxu0
        %v565 = vadd.f32 0.0, %v564
        %566 = vdwg.mxu0
        %567 = vmatpush.msra.mxu0 %v421
        %568 = vmatpush.msra.mxu0 %v418
        %569 = vmatpush.msra.mxu0 %v415
        %570 = vmatpush.msra.mxu0 %v412
        %571 = vmatpush.msra.mxu0 %v409
        %572 = vmatpush.msra.mxu0 %v406
        %573 = vmatpush.msra.mxu0 %v403
        %574 = vmatpush.msra.mxu0 %v400
        %575 = vmatpush.msra.mxu0 %v397
        %576 = vmatpush.msra.mxu0 %v394
        %577 = vmatpush.msra.mxu0 %v391
        %578 = vmatpush.msra.mxu0 %v388
        %579 = vmatpush.msra.mxu0 %v385
        %580 = vmatpush.msra.mxu0 %v382
        %581 = vmatpush.msra.mxu0 %v379
        %582 = vmatpush.msra.mxu0 %v376
        %583 = vmatmul.f32.gmra.mxu0 %v319
        %v584 = vpop.f32.mrf.mxu0
        %v585 = vadd.f32 %v556, %v584
        %586 = vmatmul.f32.gmra.mxu0 %v321
        %v587 = vpop.f32.mrf.mxu0
        %v588 = vadd.f32 %v559, %v587
        %589 = vmatmul.f32.gmra.mxu0 %v323
        %v590 = vpop.f32.mrf.mxu0
        %v591 = vadd.f32 %v562, %v590
        %592 = vmatmul.f32.gmra.mxu0 %v325
        %v593 = vpop.f32.mrf.mxu0
        %v594 = vadd.f32 %v565, %v593
        %595 = vdwg.mxu0
        %v596 = vadd.f32 %v306, %v469
        %v597 = vadd.f32 %v307, %v527
        %v598 = vadd.f32 %v308, %v585
        %v599 = vadd.f32 %v309, %v472
        %v600 = vadd.f32 %v310, %v530
        %v601 = vadd.f32 %v311, %v588
        %v602 = vadd.f32 %v312, %v475
        %v603 = vadd.f32 %v313, %v533
        %v604 = vadd.f32 %v314, %v591
        %v605 = vadd.f32 %v315, %v478
        %v606 = vadd.f32 %v316, %v536
        %v607 = vadd.f32 %v317, %v594
        %608 = vst [vmem:[#allocation2] sm:$0xff] %v596
        %609 = vst [vmem:[#allocation2 + $0x8] sm:$0xff] %v597
        %610 = vst [vmem:[#allocation2 + $0x10] sm:$0xff] %v598
        %611 = vst [vmem:[#allocation2 + $0x18] sm:$0xff] %v599
        %612 = vst [vmem:[#allocation2 + $0x20] sm:$0xff] %v600
        %613 = vst [vmem:[#allocation2 + $0x28] sm:$0xff] %v601
        %614 = vst [vmem:[#allocation2 + $0x30] sm:$0xff] %v602
        %615 = vst [vmem:[#allocation2 + $0x38] sm:$0xff] %v603
        %616 = vst [vmem:[#allocation2 + $0x40] sm:$0xff] %v604
        %617 = vst [vmem:[#allocation2 + $0x48] sm:$0xff] %v605
        %618 = vst [vmem:[#allocation2 + $0x50] sm:$0xff] %v606
        %619 = vst [vmem:[#allocation2 + $0x58] sm:$0xff] %v607
        // Predicated region
        $region49: #{tpu_custom_call.1} parent=31 // pred_check
          %p620 = pneg %p290
        $region50: #{tpu_custom_call.1} parent=31 // pred_check_branch
          %622 = sbr.rel (%p620) target = $region52
        $region51: #{tpu_custom_call.1} parent=31 // pred_region
          %v623 = vld [vmem:[#allocation2] sm:$0xff]
          %v624 = vld [vmem:[#allocation2 + $0x8] sm:$0xff]
          %v625 = vld [vmem:[#allocation2 + $0x10] sm:$0xff]
          %v626 = vld [vmem:[#allocation2 + $0x18] sm:$0xff]
          %v627 = vld [vmem:[#allocation2 + $0x20] sm:$0xff]
          %v628 = vld [vmem:[#allocation2 + $0x28] sm:$0xff]
          %v629 = vld [vmem:[#allocation2 + $0x30] sm:$0xff]
          %v630 = vld [vmem:[#allocation2 + $0x38] sm:$0xff]
          %v631 = vld [vmem:[#allocation2 + $0x40] sm:$0xff]
          %v632 = vld [vmem:[#allocation2 + $0x48] sm:$0xff]
          %v633 = vld [vmem:[#allocation2 + $0x50] sm:$0xff]
          %v634 = vld [vmem:[#allocation2 + $0x58] sm:$0xff]
          %v635 = vld [vmem:[%s254] sm:$0x7]
          %v637 = vperm.slane %v635, 0
          %v638 = vperm.slane %v635, 1
          %v639 = vperm.slane %v635, 2
          %v643 = vadd.f32 %v623, %v637
          %v644 = vadd.f32 %v624, %v638
          %v645 = vadd.f32 %v625, %v639
          %v646 = vadd.f32 %v626, %v637
          %v647 = vadd.f32 %v627, %v638
          %v648 = vadd.f32 %v628, %v639
          %v649 = vadd.f32 %v629, %v637
          %v650 = vadd.f32 %v630, %v638
          %v651 = vadd.f32 %v631, %v639
          %v652 = vadd.f32 %v632, %v637
          %v653 = vadd.f32 %v633, %v638
          %v654 = vadd.f32 %v634, %v639
          %655 = vst [vmem:[%s282] sm:$0xff] %v643
          %656 = vst [vmem:[%s282 + $0x8] sm:$0xff] %v644
          %657 = vst [vmem:[%s282 + $0x10] sm:$0xff] %v645
          %658 = vst [vmem:[%s282 + $0x18] sm:$0xff] %v646
          %659 = vst [vmem:[%s282 + $0x20] sm:$0xff] %v647
          %660 = vst [vmem:[%s282 + $0x28] sm:$0xff] %v648
          %661 = vst [vmem:[%s282 + $0x30] sm:$0xff] %v649
          %662 = vst [vmem:[%s282 + $0x38] sm:$0xff] %v650
          %663 = vst [vmem:[%s282 + $0x40] sm:$0xff] %v651
          %664 = vst [vmem:[%s282 + $0x48] sm:$0xff] %v652
          %665 = vst [vmem:[%s282 + $0x50] sm:$0xff] %v653
          %666 = vst [vmem:[%s282 + $0x58] sm:$0xff] %v654
        $region52: #{tpu_custom_call.1} parent=31 // pred_fallthru
          _
        %s667 = sand.u32 %s132, 1
        %s668 = scalar_lea.sflag [#allocation5], %s667
        %s669 = sand.u32 %s132, 1
        %s670 = smul.addr %s669, 96
        %s671 = scalar_lea.vmem [#allocation9], %s670
        // Predicated region
        $region53: #{tpu_custom_call.1} parent=31 // pred_check
          %p672 = pneg %p142
        $region54: #{tpu_custom_call.1} parent=31 // pred_check_branch
          %674 = sbr.rel (%p672) target = $region56
        $region55: #{tpu_custom_call.1} parent=31 // pred_region
          %s675 = smul.u32 4, %s26
          %s676 = smul.u32 3, %s27
          %678 = vsyncadd %s668, 0
          %s679 = smul.addr %s675, 6
          %s680 = sadd.s32 %s676, %s679
          %s681 = smul.addr %s680, 8
          %s682 = scalar_lea.hbm %s3, %s681
          %s683 = sshll.u32 %s671, 4
          %s684 = int_to_ptr.vmem [resolvable:$true] %s683
          %s685 = sshll.u32 %s682, 4
          %s686 = int_to_ptr.hbm [resolvable:$true] %s685
          %691 = dma.vmem_to_hbm [thread:$0]  %s684, 1536, %s686, %s668, 384, 768, 24
        $region56: #{tpu_custom_call.1} parent=31 // pred_fallthru
          _
      $region32: #{tpu_custom_call.1} parent=5 // pred_fallthru
        _
      %p692 = scmp.le.s32.totalorder 2, %s16
      // Predicated region
      $region57: #{tpu_custom_call.1} parent=5 // pred_check
        %p693 = pneg %p692
      $region58: #{tpu_custom_call.1} parent=5 // pred_check_branch
        %695 = sbr.rel (%p693) target = $region60
      $region59: #{tpu_custom_call.1} parent=5 // pred_region
        %s696 = ssub.s32 %s16, 2
        // Predicated region
        $region61: #{tpu_custom_call.1} parent=59 // pred_check
          %p697 = pneg %p148
        $region62: #{tpu_custom_call.1} parent=59 // pred_check_branch
          %699 = sbr.rel (%p697) target = $region64
        $region63: #{tpu_custom_call.1} parent=59 // pred_region
          %s700 = sand.u32 %s133, 1
          %s701 = scalar_lea.sflag [#allocation5], %s700
          %s702 = sand.u32 %s133, 1
          %s703 = smul.addr %s702, 96
          %s704 = scalar_lea.vmem [#allocation9], %s703
          %706 = dma.done %s701, 1536
        $region64: #{tpu_custom_call.1} parent=59 // pred_fallthru
          _
      $region60: #{tpu_custom_call.1} parent=5 // pred_fallthru
        _
    $region6: #{tpu_custom_call.1} parent=1 // loop_footer
      %s20 = sadd.s32 1, %s16
    $region7: #{tpu_custom_call.1} parent=1 // loop_footer_branch
      %15 = sbr.rel target = $region3
    $region8: #{tpu_custom_call.1} parent=1 // loop_exit
      _
    %707 = vsyncpa [#allocation4], 1
    %s708 = scalar_lea.sflag [#allocation4], 1
    %709 = vsyncpa %s708, 1
    %710 = vsyncpa [#allocation7], 1
    %s711 = scalar_lea.sflag [#allocation7], 1
    %712 = vsyncpa %s711, 1
    %713 = vsyncpa [#allocation5], 1
    %s714 = scalar_lea.sflag [#allocation5], 1
    %715 = vsyncpa %s714, 1

</llo_original>
